<compile_context>
chip_gen: v7x
topology: tpu7x:2x2x1
jax: 0.10.0
libtpu: 0.0.40
codegen_flags: <defaults>
</compile_context>

<pallas_src>
import functools

import jax
import jax.numpy as jnp
from jax.experimental import pallas as pl
from jax.experimental.pallas import tpu as pltpu


def fade_mask(Hp: int, Wp: int, p: int, dtype=jnp.float32) -> jnp.ndarray:
    """Recreation of the P_mat buffer (built in f32, like PyTorch)."""
    cs = jnp.arange(p, dtype=jnp.float32) / p          # linspace(0,1,p,endpoint=False)
    frow = jnp.ones((Hp,), jnp.float32).at[:p].set(cs).at[Hp - p:].set(cs[::-1])
    fcol = jnp.ones((Wp,), jnp.float32).at[:p].set(cs).at[Wp - p:].set(cs[::-1])
    return (frow[:, None] * fcol[None, :]).astype(dtype)


def _fade_pad_kernel(x_ref, mask_ref, o_ref):
    """TB planes: replication-pad (H,W)->(Hp,Wp), apply fade, one full store."""
    x = x_ref[...]                                     # (TB, H, W)
    TB, H, W = x.shape
    Hp, Wp = o_ref.shape[1], o_ref.shape[2]
    p = (Hp - H) // 2

    # Replication pad along W (lane axis): (TB, H, Wp)
    left = jnp.broadcast_to(x[:, :, 0:1], (TB, H, p))
    right = jnp.broadcast_to(x[:, :, W - 1:W], (TB, H, p))
    xw = jnp.concatenate([left, x, right], axis=2)

    # Replication pad along H (sublane axis): (TB, Hp, Wp)
    top = jnp.broadcast_to(xw[:, 0:1, :], (TB, p, Wp))
    bot = jnp.broadcast_to(xw[:, H - 1:H, :], (TB, p, Wp))
    xp = jnp.concatenate([top, xw, bot], axis=1)

    # Single full-width, lane-0-aligned store per plane (no masked band stores).
    o_ref[...] = (xp.astype(jnp.float32) * mask_ref[...][None]).astype(o_ref.dtype)


def _padded_plane_bytes(h: int, w: int, dtype) -> int:
    """VMEM bytes of one (h, w) tile after (sublane, 128-lane) layout padding."""
    itemsize = jnp.dtype(dtype).itemsize
    sub = max(8, 32 // itemsize)                       # 8 f32 / 16 bf16 / 32 int8
    hp = -(-h // sub) * sub
    wp = -(-w // 128) * 128
    return hp * wp * itemsize


def _vmem_budget_bytes() -> int:
    """Generation-aware VMEM budget (~3/4 of physical, capped at 96 MiB)."""
    cap = None
    try:
        info = pltpu.get_tpu_info()
        cap = getattr(info, "vmem_capacity_bytes", None)
    except Exception:
        cap = None
    if not cap:
        cap = 64 * 1024 * 1024                         # conservative (v7x per-TC)
    return min((3 * int(cap)) // 4, 96 * 1024 * 1024)


@functools.partial(jax.jit, static_argnums=(1,))
def fade_to_black_pad(x: jnp.ndarray, p: int) -> jnp.ndarray:
    """forward() of FadeToBlackMatrix for x of shape (N, C, H, W)."""
    N, C, H, W = x.shape
    assert 1 <= p < H and p < W, "replication pad requires 1 <= p < H, W"
    Hp, Wp = H + 2 * p, W + 2 * p
    out_dtype = jnp.result_type(x.dtype, jnp.float32)  # x * f32 P_mat buffer

    B = N * C
    xb = x.reshape(B, H, W)
    mask = fade_mask(Hp, Wp, p, jnp.float32)

    # --- VMEM-aware TB: padded tile bytes, double-buffered, vs. budget ---
    in_plane = _padded_plane_bytes(H, W, x.dtype)
    out_plane = _padded_plane_bytes(Hp, Wp, out_dtype)
    mask_bytes = _padded_plane_bytes(Hp, Wp, jnp.float32)

    budget = _vmem_budget_bytes()
    avail = budget - 2 * mask_bytes - (2 << 20)        # headroom for internal scratch
    TB = max(1, avail // (2 * (in_plane + out_plane)))
    TB = min(TB, B)
    if B >= 2:
        TB = min(TB, -(-B // 2))                       # >= 2 parallel steps (v7x dual-TC)
    TB = int(TB)

    grid = (pl.cdiv(B, TB),)                           # ragged last block masked by Pallas

    flops = B * Hp * Wp                                # one multiply per output element
    bytes_accessed = (B * H * W * jnp.dtype(x.dtype).itemsize
                      + B * Hp * Wp * jnp.dtype(out_dtype).itemsize
                      + Hp * Wp * 4)

    yb = pl.pallas_call(
        _fade_pad_kernel,
        out_shape=jax.ShapeDtypeStruct((B, Hp, Wp), out_dtype),
        grid_spec=pltpu.PrefetchScalarGridSpec(
            num_scalar_prefetch=0,
            grid=grid,
            in_specs=[
                pl.BlockSpec((TB, H, W), lambda i: (i, 0, 0)),
                pl.BlockSpec((Hp, Wp), lambda i: (0, 0)),   # resident fade mask
            ],
            out_specs=pl.BlockSpec((TB, Hp, Wp), lambda i: (i, 0, 0)),
        ),
        compiler_params=pltpu.CompilerParams(
            dimension_semantics=("parallel",),
            vmem_limit_bytes=int(budget),
        ),
        cost_estimate=pl.CostEstimate(
            flops=flops, transcendentals=0, bytes_accessed=int(bytes_accessed)),
    )(xb, mask)

    return yb.reshape(N, C, Hp, Wp)


if __name__ == "__main__":
    key = jax.random.PRNGKey(0)
    N, C, H, W = 2, 4, 16, 16
    kernel_size = (2, 2)          # module is only shape-consistent for square kernel_size
    assert kernel_size[0] == kernel_size[1]
    p = kernel_size[0]

    x = jax.random.normal(key, (N, C, H, W), dtype=jnp.float32)

    y = fade_to_black_pad(x, p)
    y = jax.block_until_ready(y)

    # Pure-JAX reference (replication pad == edge pad, f32 mask like the buffer).
    mask = fade_mask(H + 2 * p, W + 2 * p, p, jnp.float32)
    y_ref = (jnp.pad(x, ((0, 0), (0, 0), (p, p), (p, p)), mode="edge")
             .astype(jnp.float32) * mask[None, None])

    assert y.shape == (N, C, H + 2 * p, W + 2 * p), y.shape
    assert y.dtype == y_ref.dtype, (y.dtype, y_ref.dtype)
    assert jnp.allclose(y, y_ref, atol=1e-6), "Pallas output mismatch vs reference"
    print("KERNEL_OK")
</pallas_src>

<mosaic_0001>
module attributes {stable_mosaic.version = 11 : i64} {
  func.func @_fade_pad_kernel(%arg0: i32, %arg1: memref<4x16x16xf32, #tpu.memory_space<vmem>>, %arg2: memref<20x20xf32, #tpu.memory_space<vmem>>, %arg3: memref<4x20x20xf32, #tpu.memory_space<vmem>>) attributes {dimension_semantics = [#tpu.dimension_semantics<parallel>], iteration_bounds = array<i64: 2>, scalar_prefetch = 0 : i64, scratch_operands = 0 : i64, tpu.core_type = #tpu.core_type<tc>, window_params = [{transform_indices = @transform_0, window_bounds = array<i64: 4, 16, 16>}, {pipeline_mode = #tpu.pipeline_mode<synchronous>, transform_indices = @transform_1, window_bounds = array<i64: 20, 20>}, {transform_indices = @transform_2, window_bounds = array<i64: 4, 20, 20>}]} {
    %c0 = arith.constant 0 : index
    %c0_0 = arith.constant 0 : index
    %c0_1 = arith.constant 0 : index
    %0 = vector.load %arg1[%c0, %c0_0, %c0_1] : memref<4x16x16xf32, #tpu.memory_space<vmem>>, vector<4x16x16xf32>
    %1 = vector.extract_strided_slice %0 {offsets = [0, 0, 0], sizes = [4, 16, 1], strides = [1, 1, 1]} : vector<4x16x16xf32> to vector<4x16x1xf32>
    %2 = vector.shape_cast %1 : vector<4x16x1xf32> to vector<4x16x1xf32>
    %3 = vector.broadcast %2 : vector<4x16x1xf32> to vector<4x16x2xf32>
    %4 = vector.extract_strided_slice %0 {offsets = [0, 0, 15], sizes = [4, 16, 1], strides = [1, 1, 1]} : vector<4x16x16xf32> to vector<4x16x1xf32>
    %5 = vector.shape_cast %4 : vector<4x16x1xf32> to vector<4x16x1xf32>
    %6 = vector.broadcast %5 : vector<4x16x1xf32> to vector<4x16x2xf32>
    %7 = tpu.concatenate %3, %0, %6 in 2 : vector<4x16x2xf32>, vector<4x16x16xf32>, vector<4x16x2xf32> -> vector<4x16x20xf32>
    %8 = vector.extract_strided_slice %7 {offsets = [0, 0, 0], sizes = [4, 1, 20], strides = [1, 1, 1]} : vector<4x16x20xf32> to vector<4x1x20xf32>
    %9 = vector.shape_cast %8 : vector<4x1x20xf32> to vector<4x1x20xf32>
    %10 = vector.broadcast %9 : vector<4x1x20xf32> to vector<4x2x20xf32>
    %11 = vector.extract_strided_slice %7 {offsets = [0, 15, 0], sizes = [4, 1, 20], strides = [1, 1, 1]} : vector<4x16x20xf32> to vector<4x1x20xf32>
    %12 = vector.shape_cast %11 : vector<4x1x20xf32> to vector<4x1x20xf32>
    %13 = vector.broadcast %12 : vector<4x1x20xf32> to vector<4x2x20xf32>
    %14 = tpu.concatenate %10, %7, %13 in 1 : vector<4x2x20xf32>, vector<4x16x20xf32>, vector<4x2x20xf32> -> vector<4x20x20xf32>
    %c0_2 = arith.constant 0 : index
    %c0_3 = arith.constant 0 : index
    %15 = vector.load %arg2[%c0_2, %c0_3] : memref<20x20xf32, #tpu.memory_space<vmem>>, vector<20x20xf32>
    %16 = vector.shape_cast %15 : vector<20x20xf32> to vector<1x20x20xf32>
    %17 = vector.broadcast %16 : vector<1x20x20xf32> to vector<4x20x20xf32>
    %18 = arith.mulf %14, %17 : vector<4x20x20xf32>
    %c0_4 = arith.constant 0 : index
    %c0_5 = arith.constant 0 : index
    %c0_6 = arith.constant 0 : index
    %19 = vector.load %arg3[%c0_4, %c0_5, %c0_6] : memref<4x20x20xf32, #tpu.memory_space<vmem>>, vector<4x20x20xf32>
    tpu.vector_store %arg3[%c0_4, %c0_5, %c0_6], %18 {strides = array<i32>} : memref<4x20x20xf32, #tpu.memory_space<vmem>>, vector<4x20x20xf32>,
    return
  }
  func.func @transform_0(%arg0: i32) -> (i32, i32, i32) {
    %c0_i32 = arith.constant 0 : i32
    %c0_i32_0 = arith.constant 0 : i32
    %c0_i32_1 = arith.constant 0 : i32
    return %arg0, %c0_i32, %c0_i32_0 : i32, i32, i32
  }
  func.func @transform_1(%arg0: i32) -> (i32, i32) {
    %c0_i32 = arith.constant 0 : i32
    %c0_i32_0 = arith.constant 0 : i32
    %c0_i32_1 = arith.constant 0 : i32
    return %c0_i32, %c0_i32_0 : i32, i32
  }
  func.func @transform_2(%arg0: i32) -> (i32, i32, i32) {
    %c0_i32 = arith.constant 0 : i32
    %c0_i32_0 = arith.constant 0 : i32
    %c0_i32_1 = arith.constant 0 : i32
    return %arg0, %c0_i32, %c0_i32_0 : i32, i32, i32
  }
}

</mosaic_0001>

<llo_original>
// kernel: reverse
$region0: #{reverse}
  %s0 = inlined_call_operand.vmem [shape: f32[2], index: 0, kind: input, shape index: {}]
  %s1 = inlined_call_operand.vmem [shape: f32[2], index: 1, kind: output, shape index: {}]
  %v2 = vlaneseq
  %v3 = vsub.s32 1, %v2
  %4 = vset.pattern.permute.xlu0 %v3
  $region1: #{reverse} parent=0
    #allocation0 [shape = 'u8[8192]{0}', space=vmem, size = 0x2000, scoped, tag = 'operand span for operand 0']
    #allocation1 [shape = 'u8[1024]{0}', space=vmem, size = 0x400, scoped, tag = 'packed  for operand 0']
    #allocation2 [shape = 'u8[4096]{0}', space=vmem, size = 0x1000, scoped, tag = 'operand span for operand 1']
    #allocation3 [shape = 'u8[512]{0}', space=vmem, size = 0x400, scoped, tag = 'packed  for operand 1']
    %s5 = scalar_lea.vmem [#allocation1], 1
    // Predicated region
    $region2: #{reverse} parent=1 // pred_check
      _
    $region3: #{reverse} parent=1 // pred_check_branch
      %7 = sbr.rel (0) target = $region5
    $region4: #{reverse} parent=1 // pred_region
      // Predicated region
      $region6: #{reverse} parent=4 // pred_check
        _
      $region7: #{reverse} parent=4 // pred_check_branch
        %9 = sbr.rel target = $region9
      $region8: #{reverse} parent=4 // pred_region
        // Predicated region
        $region21: #{reverse} parent=8 // pred_check
          _
        $region22: #{reverse} parent=8 // pred_check_branch
          %24 = sbr.rel (0) target = $region24
        $region23: #{reverse} parent=8 // pred_region
          loop: start=0, step=1, limit=1
          $region25: #{reverse} parent=23 // loop_pre_header
            _
          $region26: #{reverse} parent=23 // loop_header
            %s27 = sphi 0, %s31
            %p28 = scmp.ge.s32.totalorder %s27, 1
            %s32 = sphi %s0, %s0
            %s33 = sphi %s5, %s5
          $region27: #{reverse} parent=23 // loop_header_branch
            %30 = sbr.rel (%p28) target = $region31
          $region28: #{reverse} parent=23 // loop_body
            %v34 = vld [vmem:[%s32] sm:$0x1]
            %35 = vst [vmem:[%s33] sm:$0x1] %v34
          $region29: #{reverse} parent=23 // loop_footer
            %s31 = sadd.s32 1, %s27
          $region30: #{reverse} parent=23 // loop_footer_branch
            %26 = sbr.rel target = $region26
          $region31: #{reverse} parent=23 // loop_exit
            _
        $region24: #{reverse} parent=8 // pred_fallthru
          _
      $region9: #{reverse} parent=4 // pred_fallthru
        _
      // Predicated region
      $region10: #{reverse} parent=4 // pred_check
        _
      $region11: #{reverse} parent=4 // pred_check_branch
        %11 = sbr.rel (0) target = $region13
      $region12: #{reverse} parent=4 // pred_region
        loop: start=0, step=1, limit=1
        $region14: #{reverse} parent=12 // loop_pre_header
          _
        $region15: #{reverse} parent=12 // loop_header
          %s14 = sphi 0, %s18
          %p15 = scmp.ge.s32.totalorder %s14, 1
          %s19 = sphi %s0, %s0
          %s20 = sphi %s5, %s5
        $region16: #{reverse} parent=12 // loop_header_branch
          %17 = sbr.rel (%p15) target = $region20
        $region17: #{reverse} parent=12 // loop_body
          %v21 = vld [vmem:[%s19] sm:$0x1]
          %22 = vst [vmem:[%s20] sm:$0x1] %v21
        $region18: #{reverse} parent=12 // loop_footer
          %s18 = sadd.s32 1, %s14
        $region19: #{reverse} parent=12 // loop_footer_branch
          %13 = sbr.rel target = $region15
        $region20: #{reverse} parent=12 // loop_exit
          _
      $region13: #{reverse} parent=4 // pred_fallthru
        _
    $region5: #{reverse} parent=1 // pred_fallthru
      _
    %36 = vnop
    %s38 = sshllo.u32 0, 1
    %s39 = scalar_lea.vmem [#allocation1], 1
    %v40 = vld [vmem:[%s39] sm:%s38]
    %s41 = scalar_lea.vmem [#allocation0], 8
    %42 = vst [vmem:[%s41] sm:%s38] %v40
    %v43 = vld [vmem:[#allocation1] sm:%s38]
    %44 = vst [vmem:[#allocation0] sm:%s38] %v43
    %s45 = scalar_lea.vmem [#allocation0], 7
    %v46 = vld [vmem:[%s45] ss:$-1 sm:$0xff]
    %v47 = vrot.slane %v46, 7
    %48 = vperm.xlu0 %4, %v47
    %v49 = vpop.permute.xlu0 %48
    %50 = vst [vmem:[#allocation2] sm:$0xff] %v49
    %s51 = scalar_lea.vmem [#allocation0], 8
    %s52 = scalar_lea.vmem %s51, 7 [#allocation0]
    %v53 = vld [vmem:[%s52] ss:$-1 sm:$0xff]
    %v54 = vrot.slane %v53, 7
    %55 = vperm.xlu0 %4, %v54
    %v56 = vpop.permute.xlu0 %55
    %v57 = vlaneseq
    %v58 = vshrl.u32 %v57, 7
    %vm59 = vcmp.lt.s32.totalorder %v58, 1
    %60 = vst.msk [vmem:[#allocation2] sm:$0xff] %vm59, %v56
    %s62 = sshllo.u32 0, 1
    %v64 = vld [vmem:[#allocation2] sm:%s62]
    %s65 = sshllo.u32 0, 1
    %66 = vst [vmem:[#allocation3] sm:%s65] %v64
    // Predicated region
    $region32: #{reverse} parent=1 // pred_check
      _
    $region33: #{reverse} parent=1 // pred_check_branch
      %68 = sbr.rel (0) target = $region35
    $region34: #{reverse} parent=1 // pred_region
      // Predicated region
      $region36: #{reverse} parent=34 // pred_check
        _
      $region37: #{reverse} parent=34 // pred_check_branch
        %70 = sbr.rel target = $region39
      $region38: #{reverse} parent=34 // pred_region
        // Predicated region
        $region51: #{reverse} parent=38 // pred_check
          _
        $region52: #{reverse} parent=38 // pred_check_branch
          %85 = sbr.rel (0) target = $region54
        $region53: #{reverse} parent=38 // pred_region
          loop: start=0, step=1, limit=1
          $region55: #{reverse} parent=53 // loop_pre_header
            _
          $region56: #{reverse} parent=53 // loop_header
            %s88 = sphi 0, %s92
            %p89 = scmp.ge.s32.totalorder %s88, 1
            %s93 = sphi [#allocation3], [#allocation3]
            %s94 = sphi %s1, %s1
          $region57: #{reverse} parent=53 // loop_header_branch
            %91 = sbr.rel (%p89) target = $region61
          $region58: #{reverse} parent=53 // loop_body
            %v95 = vld [vmem:[%s93] sm:$0x1]
            %96 = vst [vmem:[%s94] sm:$0x1] %v95
          $region59: #{reverse} parent=53 // loop_footer
            %s92 = sadd.s32 1, %s88
          $region60: #{reverse} parent=53 // loop_footer_branch
            %87 = sbr.rel target = $region56
          $region61: #{reverse} parent=53 // loop_exit
            _
        $region54: #{reverse} parent=38 // pred_fallthru
          _
      $region39: #{reverse} parent=34 // pred_fallthru
        _
      // Predicated region
      $region40: #{reverse} parent=34 // pred_check
        _
      $region41: #{reverse} parent=34 // pred_check_branch
        %72 = sbr.rel (0) target = $region43
      $region42: #{reverse} parent=34 // pred_region
        loop: start=0, step=1, limit=1
        $region44: #{reverse} parent=42 // loop_pre_header
          _
        $region45: #{reverse} parent=42 // loop_header
          %s75 = sphi 0, %s79
          %p76 = scmp.ge.s32.totalorder %s75, 1
          %s80 = sphi [#allocation3], [#allocation3]
          %s81 = sphi %s1, %s1
        $region46: #{reverse} parent=42 // loop_header_branch
          %78 = sbr.rel (%p76) target = $region50
        $region47: #{reverse} parent=42 // loop_body
          %v82 = vld [vmem:[%s80] sm:$0x1]
          %83 = vst [vmem:[%s81] sm:$0x1] %v82
        $region48: #{reverse} parent=42 // loop_footer
          %s79 = sadd.s32 1, %s75
        $region49: #{reverse} parent=42 // loop_footer_branch
          %74 = sbr.rel target = $region45
        $region50: #{reverse} parent=42 // loop_exit
          _
      $region43: #{reverse} parent=34 // pred_fallthru
        _
    $region35: #{reverse} parent=1 // pred_fallthru
      _
    %97 = vnop

// kernel: fade_to_black_pad.1
$region0: #{fade_to_black_pad.1}
  #allocation0 [shape = 'u32[]', space=smem, size = 0x4, offset = 0x4, fixed_abs, tag = 'smem constant byte address 0x4 - core index']
  #allocation1 [shape = 'u32[144,128]{1,0:T(1,128)}', space=vmem, size = 0x12000, scoped, tag = 'internal scratch']
  %s0 = inlined_call_operand.hbm [shape: f32[8,16,16], index: 0, kind: input, shape index: {}]
  %s1 = inlined_call_operand.vmem [shape: f32[20,20], index: 1, kind: input, shape index: {}]
  %s2 = inlined_call_operand.vmem [shape: f32[8,20,20], index: 2, kind: output, shape index: {}]
  %s3 = sld [smem:[#allocation0]]
  $region45: #{fade_to_black_pad.1} parent=0
    _
  %s5 = ssub.s32 1, %s3
  %s6 = scalar_select 0, %s5, %s3
  $region1: #{fade_to_black_pad.1} parent=0
    #allocation2 [shape = 'u8[65536]{0}', space=vmem, size = 0x10000, scoped, tag = 'input window, operand 0']
    #allocation3 [shape = 's32[2]{0}', space=sflag, size = 0x8, scoped, tag = 'scoped memory for fade_to_black_pad.1']
    %7 = vsyncpa [#allocation3], 0
    %s8 = scalar_lea.sflag [#allocation3], 1
    %9 = vsyncpa %s8, 0
    loop: start=0, step=1, limit=4
    $region2: #{fade_to_black_pad.1} parent=1 // loop_pre_header
      _
    $region3: #{fade_to_black_pad.1} parent=1 // loop_header
      %s11 = sphi 0, %s15
      %p12 = scmp.ge.s32.totalorder %s11, 4
      %s21 = sphi 0, %s23
      %s24 = sphi 0, %s21
      %s25 = sphi 0, %s24
      %s41 = sphi 0, %s25
      %s45 = sphi 0, %s45
      %s47 = sphi 0, %s45
      %s48 = sphi 0, %s47
      %s62 = sphi 0, %s48
      %s68 = sphi 0, %s70
      %s71 = sphi 0, %s68
      %s72 = sphi 0, %s71
      %s88 = sphi 0, %s72
    $region4: #{fade_to_black_pad.1} parent=1 // loop_header_branch
      %14 = sbr.rel (%p12) target = $region8
    $region5: #{fade_to_black_pad.1} parent=1 // loop_body
      %s16 = ssub.s32 %s11, 1
      %s17 = ssub.s32 %s11, 2
      %s18 = sadd.s32 %s11, 1
      %s19 = ssub.s32 %s11, %s18
      %p20 = scmp.eq.s32.totalorder %s19, 0
      %s22 = sadd.s32 %s21, 1
      %s23 = scalar_select %p20, %s21, %s22
      %p26 = pneg %p20
      %p27 = scmp.eq.s32.totalorder %s11, 1
      %p28 = por %p26, %p27
      %p29 = scmp.ne.s32.totalorder %s21, %s24
      %p30 = scmp.eq.s32.totalorder %s11, 0
      %p31 = por %p29, %p30
      %p32 = scmp.ne.s32.totalorder %s21, %s24
      %p33 = scmp.eq.s32.totalorder %s16, 1
      %p34 = por %p32, %p33
      %p35 = scmp.ne.s32.totalorder %s24, %s25
      %p36 = scmp.eq.s32.totalorder %s16, 0
      %p37 = por %p35, %p36
      %p38 = scmp.ne.s32.totalorder %s24, %s25
      %p39 = scmp.eq.s32.totalorder %s17, 1
      %p40 = por %p38, %p39
      %p42 = scmp.ne.s32.totalorder %s25, %s41
      %p43 = scmp.eq.s32.totalorder %s17, 0
      %p44 = por %p42, %p43
      %s46 = sadd.s32 %s45, 1
      %p49 = scmp.eq.s32.totalorder %s11, 1
      %p50 = scmp.ne.s32.totalorder %s45, %s47
      %p51 = scmp.eq.s32.totalorder %s11, 0
      %p52 = por %p50, %p51
      %p53 = scmp.ne.s32.totalorder %s45, %s47
      %p54 = scmp.eq.s32.totalorder %s16, 1
      %p55 = por %p53, %p54
      %p56 = scmp.ne.s32.totalorder %s47, %s48
      %p57 = scmp.eq.s32.totalorder %s16, 0
      %p58 = por %p56, %p57
      %p59 = scmp.ne.s32.totalorder %s47, %s48
      %p60 = scmp.eq.s32.totalorder %s17, 1
      %p61 = por %p59, %p60
      %p63 = scmp.ne.s32.totalorder %s48, %s62
      %p64 = scmp.eq.s32.totalorder %s17, 0
      %p65 = por %p63, %p64
      %s66 = ssub.s32 %s11, %s18
      %p67 = scmp.eq.s32.totalorder %s66, 0
      %s69 = sadd.s32 %s68, 1
      %s70 = scalar_select %p67, %s68, %s69
      %p73 = pneg %p67
      %p74 = scmp.eq.s32.totalorder %s11, 1
      %p75 = por %p73, %p74
      %p76 = scmp.ne.s32.totalorder %s68, %s71
      %p77 = scmp.eq.s32.totalorder %s11, 0
      %p78 = por %p76, %p77
      %p79 = scmp.ne.s32.totalorder %s68, %s71
      %p80 = scmp.eq.s32.totalorder %s16, 1
      %p81 = por %p79, %p80
      %p82 = scmp.ne.s32.totalorder %s71, %s72
      %p83 = scmp.eq.s32.totalorder %s16, 0
      %p84 = por %p82, %p83
      %p85 = scmp.ne.s32.totalorder %s71, %s72
      %p86 = scmp.eq.s32.totalorder %s17, 1
      %p87 = por %p85, %p86
      %p89 = scmp.ne.s32.totalorder %s72, %s88
      %p90 = scmp.eq.s32.totalorder %s17, 0
      %p91 = por %p89, %p90
      %p92 = scmp.le.s32.totalorder 1, %s11
      %p93 = scmp.lt.s32.totalorder %s11, 3
      %p94 = pnand %p92, %p93
      %p95 = pneg %p94
      // Predicated region
      $region9: #{fade_to_black_pad.1} parent=5 // pred_check
        _
      $region10: #{fade_to_black_pad.1} parent=5 // pred_check_branch
        %97 = sbr.rel (%p94) target = $region12
      $region11: #{fade_to_black_pad.1} parent=5 // pred_region
        %s98 = ssub.s32 %s11, 1
        // Predicated region
        $region13: #{fade_to_black_pad.1} parent=11 // pred_check
          %p99 = pneg %p58
        $region14: #{fade_to_black_pad.1} parent=11 // pred_check_branch
          %101 = sbr.rel (%p99) target = $region16
        $region15: #{fade_to_black_pad.1} parent=11 // pred_region
          _
        $region16: #{fade_to_black_pad.1} parent=11 // pred_fallthru
          _
      $region12: #{fade_to_black_pad.1} parent=5 // pred_fallthru
        _
      %p102 = scmp.lt.s32.totalorder %s11, 2
      // Predicated region
      $region17: #{fade_to_black_pad.1} parent=5 // pred_check
        %p103 = pneg %p102
      $region18: #{fade_to_black_pad.1} parent=5 // pred_check_branch
        %105 = sbr.rel (%p103) target = $region20
      $region19: #{fade_to_black_pad.1} parent=5 // pred_region
        // Predicated region
        $region21: #{fade_to_black_pad.1} parent=19 // pred_check
          %p106 = pneg %p31
        $region22: #{fade_to_black_pad.1} parent=19 // pred_check_branch
          %108 = sbr.rel (%p106) target = $region24
        $region23: #{fade_to_black_pad.1} parent=19 // pred_region
          %s109 = sand.u32 %s21, 1
          %s110 = scalar_lea.sflag [#allocation3], %s109
          %s111 = sand.u32 %s21, 1
          %s112 = smul.addr %s111, 64
          %s113 = scalar_lea.vmem [#allocation2], %s112
          %s114 = smul.u32 4, %s11
          %s116 = ssub.s32 1024, 1024
          %117 = vsyncadd %s110, %s116
          %s118 = smul.addr %s114, 2
          %s119 = smul.addr %s118, 128
          %s120 = scalar_lea.hbm %s0, %s119
          %s121 = sshll.u32 %s113, 4
          %s122 = int_to_ptr.vmem [resolvable:$true] %s121
          %127 = dma.hbm_to_vmem [thread:$0]  %s120, 1024, %s122, %s110, 128, 128, 8
        $region24: #{fade_to_black_pad.1} parent=19 // pred_fallthru
          _
      $region20: #{fade_to_black_pad.1} parent=5 // pred_fallthru
        _
      %p128 = scmp.le.s32.totalorder 1, %s11
      %p129 = scmp.lt.s32.totalorder %s11, 3
      %p130 = pnand %p128, %p129
      %p131 = pneg %p130
      // Predicated region
      $region25: #{fade_to_black_pad.1} parent=5 // pred_check
        _
      $region26: #{fade_to_black_pad.1} parent=5 // pred_check_branch
        %133 = sbr.rel (%p130) target = $region28
      $region27: #{fade_to_black_pad.1} parent=5 // pred_region
        %s134 = ssub.s32 %s11, 1
        %s135 = sand.u32 %s24, 1
        %s136 = scalar_lea.sflag [#allocation3], %s135
        %s137 = sand.u32 %s24, 1
        %s138 = smul.addr %s137, 64
        %s139 = scalar_lea.vmem [#allocation2], %s138
        // Predicated region
        $region29: #{fade_to_black_pad.1} parent=27 // pred_check
          %p140 = pneg %p37
        $region30: #{fade_to_black_pad.1} parent=27 // pred_check_branch
          %142 = sbr.rel (%p140) target = $region32
        $region31: #{fade_to_black_pad.1} parent=27 // pred_region
          %143 = dma.done %s136, 1024
        $region32: #{fade_to_black_pad.1} parent=27 // pred_fallthru
          _
        %s144 = sand.u32 %s24, 1
        %s145 = scalar_lea.sflag [#allocation3], %s144
        %s146 = sand.u32 %s24, 1
        %s147 = smul.addr %s146, 64
        %s148 = scalar_lea.vmem [#allocation2], %s147
        %p149 = pneg %p37
        %p150 = pneg %p34
        %p151 = pneg %p58
        %p152 = pneg %p55
        %p153 = pneg %p84
        %p154 = pneg %p81
        %s155 = smul.u32 4, %s16
        %p156 = scmp.lt.s32.totalorder %s155, 7
        %s157 = scalar_select %p156, %s155, 7
        %s158 = smul.addr %s157, 3
        %s159 = smul.addr %s158, 8
        %s160 = scalar_lea.vmem %s2, %s159
        %s161 = smul.u32 4, %s16
        %s162 = smul.u32 4, %s16
        %p163 = scmp.lt.s32.totalorder %s162, 7
        %s164 = scalar_select %p163, %s162, 7
        %s165 = smul.addr %s164, 3
        %s166 = smul.addr %s165, 8
        %s167 = scalar_lea.vmem %s2, %s166
        %s168 = smul.u32 4, %s16
        %v169 = vld [vmem:[%s139] sm:$0xff]
        %v170 = vld [vmem:[%s139 + $0x8] sm:$0xff]
        %v171 = vld [vmem:[%s139 + $0x10] sm:$0xff]
        %v172 = vld [vmem:[%s139 + $0x18] sm:$0xff]
        %v173 = vld [vmem:[%s139 + $0x20] sm:$0xff]
        %v174 = vld [vmem:[%s139 + $0x28] sm:$0xff]
        %v175 = vld [vmem:[%s139 + $0x30] sm:$0xff]
        %v176 = vld [vmem:[%s139 + $0x38] sm:$0xff]
        %178 = vset.pattern.permute.xlu0 0
        %179 = vperm.xlu0 %178, %v169
        %v180 = vpop.permute.xlu0 %179
        %183 = vset.pattern.permute.xlu0 0
        %184 = vperm.xlu0 %183, %v170
        %v185 = vpop.permute.xlu0 %184
        %188 = vset.pattern.permute.xlu0 0
        %189 = vperm.xlu0 %188, %v171
        %v190 = vpop.permute.xlu0 %189
        %193 = vset.pattern.permute.xlu0 0
        %194 = vperm.xlu0 %193, %v172
        %v195 = vpop.permute.xlu0 %194
        %198 = vset.pattern.permute.xlu0 0
        %199 = vperm.xlu0 %198, %v173
        %v200 = vpop.permute.xlu0 %199
        %203 = vset.pattern.permute.xlu0 0
        %204 = vperm.xlu0 %203, %v174
        %v205 = vpop.permute.xlu0 %204
        %208 = vset.pattern.permute.xlu0 0
        %209 = vperm.xlu0 %208, %v175
        %v210 = vpop.permute.xlu0 %209
        %213 = vset.pattern.permute.xlu0 0
        %214 = vperm.xlu0 %213, %v176
        %v215 = vpop.permute.xlu0 %214
        %217 = vset.pattern.permute.xlu0 15
        %218 = vperm.xlu0 %217, %v169
        %v219 = vpop.permute.xlu0 %218
        %221 = vset.pattern.permute.xlu0 15
        %222 = vperm.xlu0 %221, %v170
        %v223 = vpop.permute.xlu0 %222
        %225 = vset.pattern.permute.xlu0 15
        %226 = vperm.xlu0 %225, %v171
        %v227 = vpop.permute.xlu0 %226
        %229 = vset.pattern.permute.xlu0 15
        %230 = vperm.xlu0 %229, %v172
        %v231 = vpop.permute.xlu0 %230
        %233 = vset.pattern.permute.xlu0 15
        %234 = vperm.xlu0 %233, %v173
        %v235 = vpop.permute.xlu0 %234
        %237 = vset.pattern.permute.xlu0 15
        %238 = vperm.xlu0 %237, %v174
        %v239 = vpop.permute.xlu0 %238
        %241 = vset.pattern.permute.xlu0 15
        %242 = vperm.xlu0 %241, %v175
        %v243 = vpop.permute.xlu0 %242
        %245 = vset.pattern.permute.xlu0 15
        %246 = vperm.xlu0 %245, %v176
        %v247 = vpop.permute.xlu0 %246
        %249 = vrot.lane.b32.xlu0 %v169, 2
        %v250 = vpop.permute.xlu0 %249
        %251 = vrot.lane.b32.xlu0 %v170, 2
        %v252 = vpop.permute.xlu0 %251
        %253 = vrot.lane.b32.xlu0 %v171, 2
        %v254 = vpop.permute.xlu0 %253
        %255 = vrot.lane.b32.xlu0 %v172, 2
        %v256 = vpop.permute.xlu0 %255
        %257 = vrot.lane.b32.xlu0 %v173, 2
        %v258 = vpop.permute.xlu0 %257
        %259 = vrot.lane.b32.xlu0 %v174, 2
        %v260 = vpop.permute.xlu0 %259
        %261 = vrot.lane.b32.xlu0 %v175, 2
        %v262 = vpop.permute.xlu0 %261
        %263 = vrot.lane.b32.xlu0 %v176, 2
        %v264 = vpop.permute.xlu0 %263
        %vm273 = vcmask 15360
        %v274 = vsel %vm273, %v180, %v250
        %v275 = vsel %vm273, %v185, %v252
        %v276 = vsel %vm273, %v190, %v254
        %v277 = vsel %vm273, %v195, %v256
        %v278 = vsel %vm273, %v200, %v258
        %v279 = vsel %vm273, %v205, %v260
        %v280 = vsel %vm273, %v210, %v262
        %v281 = vsel %vm273, %v215, %v264
        %vm282 = vcmask 146432
        %v283 = vsel %vm282, %v274, %v219
        %v284 = vsel %vm282, %v275, %v223
        %v285 = vsel %vm282, %v276, %v227
        %v286 = vsel %vm282, %v277, %v231
        %v287 = vsel %vm282, %v278, %v235
        %v288 = vsel %vm282, %v279, %v239
        %v289 = vsel %vm282, %v280, %v243
        %v290 = vsel %vm282, %v281, %v247
        %v291 = vlaneseq
        %v292 = vshrl.u32 %v291, 7
        %v293 = vsub.s32 0, %v292
        %v294 = vrot.slane %v283, %v293
        %v295 = vlaneseq
        %v296 = vshrl.u32 %v295, 7
        %v297 = vsub.s32 0, %v296
        %v298 = vrot.slane %v285, %v297
        %v299 = vlaneseq
        %v300 = vshrl.u32 %v299, 7
        %v301 = vsub.s32 0, %v300
        %v302 = vrot.slane %v287, %v301
        %v303 = vlaneseq
        %v304 = vshrl.u32 %v303, 7
        %v305 = vsub.s32 0, %v304
        %v306 = vrot.slane %v289, %v305
        %v307 = vlaneseq
        %v308 = vshrl.u32 %v307, 7
        %v309 = vsub.s32 7, %v308
        %v310 = vrot.slane %v284, %v309
        %v311 = vlaneseq
        %v312 = vshrl.u32 %v311, 7
        %v313 = vsub.s32 7, %v312
        %v314 = vrot.slane %v286, %v313
        %v315 = vlaneseq
        %v316 = vshrl.u32 %v315, 7
        %v317 = vsub.s32 7, %v316
        %v318 = vrot.slane %v288, %v317
        %v319 = vlaneseq
        %v320 = vshrl.u32 %v319, 7
        %v321 = vsub.s32 7, %v320
        %v322 = vrot.slane %v290, %v321
        %vm331 = vcmask 1041408
        %v332 = vrot.slane %v283, 6
        %v333 = vrot.slane %v284, 6
        %v334 = vsel %vm331, %v332, %v333
        %v335 = vrot.slane %v285, 6
        %v336 = vrot.slane %v286, 6
        %v337 = vsel %vm331, %v335, %v336
        %v338 = vrot.slane %v287, 6
        %v339 = vrot.slane %v288, 6
        %v340 = vsel %vm331, %v338, %v339
        %v341 = vrot.slane %v289, 6
        %v342 = vrot.slane %v290, 6
        %v343 = vsel %vm331, %v341, %v342
        %v356 = vsel %vm331, %v294, %v332
        %v357 = vsel %vm331, %v298, %v335
        %v358 = vsel %vm331, %v302, %v338
        %v359 = vsel %vm331, %v306, %v341
        %v360 = vsel %vm331, %v333, %v310
        %v361 = vsel %vm331, %v336, %v314
        %v362 = vsel %vm331, %v339, %v318
        %v363 = vsel %vm331, %v342, %v322
        %v364 = vld [vmem:[%s1] sm:$0xff]
        %v365 = vld [vmem:[%s1 + $0x8] sm:$0xff]
        %v366 = vld [vmem:[%s1 + $0x10] sm:$0xf]
        %v367 = vmul.f32 %v356, %v364
        %v368 = vmul.f32 %v334, %v365
        %v369 = vmul.f32 %v360, %v366
        %v370 = vmul.f32 %v357, %v364
        %v371 = vmul.f32 %v337, %v365
        %v372 = vmul.f32 %v361, %v366
        %v373 = vmul.f32 %v358, %v364
        %v374 = vmul.f32 %v340, %v365
        %v375 = vmul.f32 %v362, %v366
        %v376 = vmul.f32 %v359, %v364
        %v377 = vmul.f32 %v343, %v365
        %v378 = vmul.f32 %v363, %v366
        %vm379 = vcmask 162816
        %380 = vst.msk [vmem:[%s167] sm:$0xff] %vm379, %v367
        %381 = vst.msk [vmem:[%s167 + $0x8] sm:$0xff] %vm379, %v368
        %vm382 = vcmask 158720
        %383 = vst.msk [vmem:[%s167 + $0x10] sm:$0xf] %vm382, %v369
        %384 = vst.msk [vmem:[%s167 + $0x18] sm:$0xff] %vm379, %v370
        %385 = vst.msk [vmem:[%s167 + $0x20] sm:$0xff] %vm379, %v371
        %386 = vst.msk [vmem:[%s167 + $0x28] sm:$0xf] %vm382, %v372
        %387 = vst.msk [vmem:[%s167 + $0x30] sm:$0xff] %vm379, %v373
        %388 = vst.msk [vmem:[%s167 + $0x38] sm:$0xff] %vm379, %v374
        %389 = vst.msk [vmem:[%s167 + $0x40] sm:$0xf] %vm382, %v375
        %390 = vst.msk [vmem:[%s167 + $0x48] sm:$0xff] %vm379, %v376
        %391 = vst.msk [vmem:[%s167 + $0x50] sm:$0xff] %vm379, %v377
        %392 = vst.msk [vmem:[%s167 + $0x58] sm:$0xf] %vm382, %v378
        %s393 = smul.u32 4, %s16
        %p394 = scmp.lt.s32.totalorder %s393, 7
        %s395 = scalar_select %p394, %s393, 7
        %s396 = smul.addr %s395, 3
        %s397 = smul.addr %s396, 8
        %s398 = scalar_lea.vmem %s2, %s397
        // Predicated region
        $region33: #{fade_to_black_pad.1} parent=27 // pred_check
          %p399 = pneg %p81
        $region34: #{fade_to_black_pad.1} parent=27 // pred_check_branch
          %401 = sbr.rel (%p399) target = $region36
        $region35: #{fade_to_black_pad.1} parent=27 // pred_region
          %s402 = smul.u32 4, %s16
        $region36: #{fade_to_black_pad.1} parent=27 // pred_fallthru
          _
      $region28: #{fade_to_black_pad.1} parent=5 // pred_fallthru
        _
      %p403 = scmp.le.s32.totalorder 2, %s11
      // Predicated region
      $region37: #{fade_to_black_pad.1} parent=5 // pred_check
        %p404 = pneg %p403
      $region38: #{fade_to_black_pad.1} parent=5 // pred_check_branch
        %406 = sbr.rel (%p404) target = $region40
      $region39: #{fade_to_black_pad.1} parent=5 // pred_region
        %s407 = ssub.s32 %s11, 2
        // Predicated region
        $region41: #{fade_to_black_pad.1} parent=39 // pred_check
          %p408 = pneg %p87
        $region42: #{fade_to_black_pad.1} parent=39 // pred_check_branch
          %410 = sbr.rel (%p408) target = $region44
        $region43: #{fade_to_black_pad.1} parent=39 // pred_region
          %s411 = smul.u32 4, %s17
          %p412 = scmp.lt.s32.totalorder %s411, 7
          %s413 = scalar_select %p412, %s411, 7
          %s414 = smul.addr %s413, 3
          %s415 = smul.addr %s414, 8
          %s416 = scalar_lea.vmem %s2, %s415
        $region44: #{fade_to_black_pad.1} parent=39 // pred_fallthru
          _
      $region40: #{fade_to_black_pad.1} parent=5 // pred_fallthru
        _
    $region6: #{fade_to_black_pad.1} parent=1 // loop_footer
      %s15 = sadd.s32 1, %s11
    $region7: #{fade_to_black_pad.1} parent=1 // loop_footer_branch
      %10 = sbr.rel target = $region3
    $region8: #{fade_to_black_pad.1} parent=1 // loop_exit
      _
    %417 = vsyncpa [#allocation3], 1
    %s418 = scalar_lea.sflag [#allocation3], 1
    %419 = vsyncpa %s418, 1

</llo_original>
